<compile_context>
chip_gen: v6e
topology: v6e:2x2x1
jax: 0.10.0
libtpu: 0.0.40
codegen_flags: <defaults>
</compile_context>

<pallas_src>
import jax
import jax.numpy as jnp
from jax import lax
from jax.experimental import pallas as pl
from jax.experimental.pallas import tpu as pltpu

B, H, W = 2, 16, 16          # batch=2, 1 input channel, 16x16 spatial
HW = H * W                   # 256 spatial positions per image (lane axis) = 2 lane tiles
LOG2_W = 4
C_OUT = 16
K = 3
KK = K * K
N_CLASSES = 10
OUT_PAD = 128                # lane-padded class dim   -> lane-dense final store
B_PAD = 8                    # sublane-padded batch dim -> unmasked final store


def cnn_kernel(img_ref, cp_ref, fc_ref, out_ref):
    # img: (B, HW)              flattened images, row-major (p = h*W + w), UNPADDED
    # cp:  (1, C_OUT, KK + 1)   conv weights (taps 0..8, t = kh*3 + kw) + bias (index 9)
    # fc:  (C_OUT + 1, OUT_PAD) rows 0..15: (fc_w.T / HW) zero-padded to 128 lanes,
    #                           row 16:     fc_b zero-padded to 128 lanes
    # out: (B_PAD, OUT_PAD)     rows >= B and lanes >= N_CLASSES are don't-care
    img = img_ref[...]
    cp = cp_ref[...]
    fcp = fc_ref[...]

    # Output-pixel coordinates along the lane axis (shared by all taps).
    pos = lax.broadcasted_iota(jnp.int32, (1, HW), 1)            # p = h*W + w
    hh = pos >> LOG2_W
    ww = pos & (W - 1)

    # Boundary masks, hoisted out of the tap loop (dh = 0 / dw = 0 need no mask).
    h_ok = {-1: hh >= 1, 0: None, 1: hh <= H - 2}
    w_ok = {-1: ww >= 1, 0: None, 1: ww <= W - 2}

    # Fused im2col + conv: each tap is a circular lane roll of the flat image (XLU),
    # masked to exact zero-padding semantics (masks also zero every wrapped lane), then
    # accumulated with a VPU broadcast-FMA into the lane-dense (B, C_OUT, HW) tile.
    acc = None
    t = 0
    for dh in (-1, 0, 1):
        for dw in (-1, 0, 1):
            off = dh * W + dw                                    # static flat shift
            shifted = img if off == 0 else pltpu.roll(img, shift=(-off) % HW, axis=1)
            masks = [m for m in (h_ok[dh], w_ok[dw]) if m is not None]
            if masks:
                valid = masks[0] if len(masks) == 1 else masks[0] & masks[1]
                tap = jnp.where(valid, shifted, 0.0)             # exact zero padding
            else:
                tap = shifted
            term = cp[:, :, t:t + 1] * tap[:, None, :]           # (B, C_OUT, HW)
            acc = term if acc is None else acc + term
            t += 1

    # Identity is a no-op; conv bias + ReLU on the VPU.
    act = jnp.maximum(acc + cp[:, :, KK:KK + 1], 0.0)            # (B, C_OUT, HW)

    # AdaptiveAvgPool2d((1,1)): lane-axis reduce. The 1/HW scale is folded into fcp.
    pooled = jnp.sum(act, axis=2)                                # (B, C_OUT)
    pooled = jnp.concatenate(
        [pooled, jnp.zeros((B_PAD - B, C_OUT), jnp.float32)], axis=0)  # (B_PAD, C_OUT)

    # Linear(16 -> 10): 16 VPU broadcast-FMAs on a single (B_PAD, OUT_PAD) tile.
    logits = fcp[C_OUT:C_OUT + 1, :]                             # bias row (1, OUT_PAD)
    for c in range(C_OUT):
        logits = logits + pooled[:, c:c + 1] * fcp[c:c + 1, :]   # (B_PAD, OUT_PAD)

    out_ref[...] = logits                                        # unmasked (8, 128) store


def prepare_params(conv_w, conv_b, fc_w, fc_b):
    """One-time parameter preprocessing (kept out of the per-call path)."""
    conv_pack = jnp.concatenate(
        [conv_w.reshape(C_OUT, KK), conv_b.reshape(C_OUT, 1)], axis=1
    ).reshape(1, C_OUT, KK + 1).astype(jnp.float32)              # (1, 16, 10)
    fcw = jnp.pad(fc_w.T / HW, ((0, 0), (0, OUT_PAD - N_CLASSES)))        # (16, 128)
    fcb = jnp.pad(fc_b.reshape(1, N_CLASSES), ((0, 0), (0, OUT_PAD - N_CLASSES)))
    fc_pack = jnp.concatenate([fcw, fcb], axis=0).astype(jnp.float32)     # (17, 128)
    return conv_pack, fc_pack


@jax.jit
def cnn_forward(x, conv_pack, fc_pack):
    """x: (B, 1, H, W) float32 (NCHW, matching PyTorch)."""
    img = x.reshape(B, HW)                                        # free layout reshape
    out = pl.pallas_call(
        cnn_kernel,
        out_shape=jax.ShapeDtypeStruct((B_PAD, OUT_PAD), jnp.float32),
        in_specs=[pl.BlockSpec(memory_space=pltpu.MemorySpace.VMEM)
                  for _ in range(3)],
        out_specs=pl.BlockSpec(memory_space=pltpu.MemorySpace.VMEM),
    )(img, conv_pack, fc_pack)
    return out[:B, :N_CLASSES]                                    # (B, 10)


def reference_forward(x, conv_w, conv_b, fc_w, fc_b):
    """Pure-JAX reference of the PyTorch forward (for correctness check)."""
    y = lax.conv_general_dilated(
        x, conv_w, window_strides=(1, 1), padding=((1, 1), (1, 1)),
        dimension_numbers=("NCHW", "OIHW", "NCHW"))
    y = jnp.maximum(y + conv_b[None, :, None, None], 0.0)
    pooled = jnp.mean(y, axis=(2, 3))
    return pooled @ fc_w.T + fc_b


if __name__ == "__main__":
    key = jax.random.PRNGKey(0)
    k_x, k_cw, k_cb, k_fw, k_fb = jax.random.split(key, 5)

    x = jax.random.normal(k_x, (B, 1, H, W), dtype=jnp.float32)
    conv_w = jax.random.normal(k_cw, (C_OUT, 1, K, K), dtype=jnp.float32) * 0.1
    conv_b = jax.random.normal(k_cb, (C_OUT,), dtype=jnp.float32) * 0.1
    fc_w = jax.random.normal(k_fw, (N_CLASSES, C_OUT), dtype=jnp.float32) * 0.1
    fc_b = jax.random.normal(k_fb, (N_CLASSES,), dtype=jnp.float32) * 0.1

    conv_pack, fc_pack = prepare_params(conv_w, conv_b, fc_w, fc_b)
    out = cnn_forward(x, conv_pack, fc_pack)
    jax.block_until_ready(out)

    ref = reference_forward(x, conv_w, conv_b, fc_w, fc_b)
    assert out.shape == (B, N_CLASSES)
    err = float(jnp.max(jnp.abs(out - ref)))
    assert jnp.allclose(out, ref, atol=1e-4, rtol=1e-4), f"max abs err {err}"
    print("KERNEL_OK")
</pallas_src>

<mosaic_0001>
module attributes {stable_mosaic.version = 11 : i64} {
  func.func @cnn_kernel(%arg0: memref<2x256xf32, #tpu.memory_space<vmem>>, %arg1: memref<1x16x10xf32, #tpu.memory_space<vmem>>, %arg2: memref<17x128xf32, #tpu.memory_space<vmem>>, %arg3: memref<8x128xf32, #tpu.memory_space<vmem>>) attributes {dimension_semantics = [], scalar_prefetch = 0 : i64, scratch_operands = 0 : i64, tpu.core_type = #tpu.core_type<tc>} {
    %c0 = arith.constant 0 : index
    %c0_0 = arith.constant 0 : index
    %0 = vector.load %arg0[%c0, %c0_0] : memref<2x256xf32, #tpu.memory_space<vmem>>, vector<2x256xf32>
    %c0_1 = arith.constant 0 : index
    %c0_2 = arith.constant 0 : index
    %c0_3 = arith.constant 0 : index
    %1 = vector.load %arg1[%c0_1, %c0_2, %c0_3] : memref<1x16x10xf32, #tpu.memory_space<vmem>>, vector<1x16x10xf32>
    %c0_4 = arith.constant 0 : index
    %c0_5 = arith.constant 0 : index
    %2 = vector.load %arg2[%c0_4, %c0_5] : memref<17x128xf32, #tpu.memory_space<vmem>>, vector<17x128xf32>
    %3 = tpu.iota {dimensions = array<i32: 1>} : vector<1x256xi32>
    %c4_i32 = arith.constant 4 : i32
    %4 = vector.broadcast %c4_i32 : i32 to vector<1x256xi32>
    %5 = arith.shrsi %3, %4 : vector<1x256xi32>
    %c15_i32 = arith.constant 15 : i32
    %6 = vector.broadcast %c15_i32 : i32 to vector<1x256xi32>
    %7 = arith.andi %3, %6 : vector<1x256xi32>
    %c1_i32 = arith.constant 1 : i32
    %8 = vector.broadcast %c1_i32 : i32 to vector<1x256xi32>
    %9 = arith.cmpi sge, %5, %8 : vector<1x256xi32>
    %c14_i32 = arith.constant 14 : i32
    %10 = vector.broadcast %c14_i32 : i32 to vector<1x256xi32>
    %11 = arith.cmpi sle, %5, %10 : vector<1x256xi32>
    %c1_i32_6 = arith.constant 1 : i32
    %12 = vector.broadcast %c1_i32_6 : i32 to vector<1x256xi32>
    %13 = arith.cmpi sge, %7, %12 : vector<1x256xi32>
    %c14_i32_7 = arith.constant 14 : i32
    %14 = vector.broadcast %c14_i32_7 : i32 to vector<1x256xi32>
    %15 = arith.cmpi sle, %7, %14 : vector<1x256xi32>
    %c17_i32 = arith.constant 17 : i32
    %16 = tpu.dynamic_rotate %0 by %c17_i32 dim 1 : vector<2x256xf32>, i32 -> vector<2x256xf32>
    %17 = arith.andi %9, %13 : vector<1x256xi1>
    %cst = arith.constant 0.000000e+00 : f32
    %18 = vector.shape_cast %17 : vector<1x256xi1> to vector<1x256xi1>
    %19 = vector.broadcast %18 : vector<1x256xi1> to vector<2x256xi1>
    %20 = vector.broadcast %cst : f32 to vector<2x256xf32>
    %21 = arith.select %19, %16, %20 : vector<2x256xi1>, vector<2x256xf32>
    %22 = vector.extract_strided_slice %1 {offsets = [0, 0, 0], sizes = [1, 16, 1], strides = [1, 1, 1]} : vector<1x16x10xf32> to vector<1x16x1xf32>
    %23 = vector.shape_cast %21 : vector<2x256xf32> to vector<2x1x256xf32>
    %24 = vector.broadcast %22 : vector<1x16x1xf32> to vector<2x16x256xf32>
    %25 = vector.broadcast %23 : vector<2x1x256xf32> to vector<2x16x256xf32>
    %26 = arith.mulf %24, %25 : vector<2x16x256xf32>
    %c16_i32 = arith.constant 16 : i32
    %27 = tpu.dynamic_rotate %0 by %c16_i32 dim 1 : vector<2x256xf32>, i32 -> vector<2x256xf32>
    %cst_8 = arith.constant 0.000000e+00 : f32
    %28 = vector.shape_cast %9 : vector<1x256xi1> to vector<1x256xi1>
    %29 = vector.broadcast %28 : vector<1x256xi1> to vector<2x256xi1>
    %30 = vector.broadcast %cst_8 : f32 to vector<2x256xf32>
    %31 = arith.select %29, %27, %30 : vector<2x256xi1>, vector<2x256xf32>
    %32 = vector.extract_strided_slice %1 {offsets = [0, 0, 1], sizes = [1, 16, 1], strides = [1, 1, 1]} : vector<1x16x10xf32> to vector<1x16x1xf32>
    %33 = vector.shape_cast %31 : vector<2x256xf32> to vector<2x1x256xf32>
    %34 = vector.broadcast %32 : vector<1x16x1xf32> to vector<2x16x256xf32>
    %35 = vector.broadcast %33 : vector<2x1x256xf32> to vector<2x16x256xf32>
    %36 = arith.mulf %34, %35 : vector<2x16x256xf32>
    %37 = arith.addf %26, %36 : vector<2x16x256xf32>
    %c15_i32_9 = arith.constant 15 : i32
    %38 = tpu.dynamic_rotate %0 by %c15_i32_9 dim 1 : vector<2x256xf32>, i32 -> vector<2x256xf32>
    %39 = arith.andi %9, %15 : vector<1x256xi1>
    %cst_10 = arith.constant 0.000000e+00 : f32
    %40 = vector.shape_cast %39 : vector<1x256xi1> to vector<1x256xi1>
    %41 = vector.broadcast %40 : vector<1x256xi1> to vector<2x256xi1>
    %42 = vector.broadcast %cst_10 : f32 to vector<2x256xf32>
    %43 = arith.select %41, %38, %42 : vector<2x256xi1>, vector<2x256xf32>
    %44 = vector.extract_strided_slice %1 {offsets = [0, 0, 2], sizes = [1, 16, 1], strides = [1, 1, 1]} : vector<1x16x10xf32> to vector<1x16x1xf32>
    %45 = vector.shape_cast %43 : vector<2x256xf32> to vector<2x1x256xf32>
    %46 = vector.broadcast %44 : vector<1x16x1xf32> to vector<2x16x256xf32>
    %47 = vector.broadcast %45 : vector<2x1x256xf32> to vector<2x16x256xf32>
    %48 = arith.mulf %46, %47 : vector<2x16x256xf32>
    %49 = arith.addf %37, %48 : vector<2x16x256xf32>
    %c1_i32_11 = arith.constant 1 : i32
    %50 = tpu.dynamic_rotate %0 by %c1_i32_11 dim 1 : vector<2x256xf32>, i32 -> vector<2x256xf32>
    %cst_12 = arith.constant 0.000000e+00 : f32
    %51 = vector.shape_cast %13 : vector<1x256xi1> to vector<1x256xi1>
    %52 = vector.broadcast %51 : vector<1x256xi1> to vector<2x256xi1>
    %53 = vector.broadcast %cst_12 : f32 to vector<2x256xf32>
    %54 = arith.select %52, %50, %53 : vector<2x256xi1>, vector<2x256xf32>
    %55 = vector.extract_strided_slice %1 {offsets = [0, 0, 3], sizes = [1, 16, 1], strides = [1, 1, 1]} : vector<1x16x10xf32> to vector<1x16x1xf32>
    %56 = vector.shape_cast %54 : vector<2x256xf32> to vector<2x1x256xf32>
    %57 = vector.broadcast %55 : vector<1x16x1xf32> to vector<2x16x256xf32>
    %58 = vector.broadcast %56 : vector<2x1x256xf32> to vector<2x16x256xf32>
    %59 = arith.mulf %57, %58 : vector<2x16x256xf32>
    %60 = arith.addf %49, %59 : vector<2x16x256xf32>
    %61 = vector.extract_strided_slice %1 {offsets = [0, 0, 4], sizes = [1, 16, 1], strides = [1, 1, 1]} : vector<1x16x10xf32> to vector<1x16x1xf32>
    %62 = vector.shape_cast %0 : vector<2x256xf32> to vector<2x1x256xf32>
    %63 = vector.broadcast %61 : vector<1x16x1xf32> to vector<2x16x256xf32>
    %64 = vector.broadcast %62 : vector<2x1x256xf32> to vector<2x16x256xf32>
    %65 = arith.mulf %63, %64 : vector<2x16x256xf32>
    %66 = arith.addf %60, %65 : vector<2x16x256xf32>
    %c255_i32 = arith.constant 255 : i32
    %67 = tpu.dynamic_rotate %0 by %c255_i32 dim 1 : vector<2x256xf32>, i32 -> vector<2x256xf32>
    %cst_13 = arith.constant 0.000000e+00 : f32
    %68 = vector.shape_cast %15 : vector<1x256xi1> to vector<1x256xi1>
    %69 = vector.broadcast %68 : vector<1x256xi1> to vector<2x256xi1>
    %70 = vector.broadcast %cst_13 : f32 to vector<2x256xf32>
    %71 = arith.select %69, %67, %70 : vector<2x256xi1>, vector<2x256xf32>
    %72 = vector.extract_strided_slice %1 {offsets = [0, 0, 5], sizes = [1, 16, 1], strides = [1, 1, 1]} : vector<1x16x10xf32> to vector<1x16x1xf32>
    %73 = vector.shape_cast %71 : vector<2x256xf32> to vector<2x1x256xf32>
    %74 = vector.broadcast %72 : vector<1x16x1xf32> to vector<2x16x256xf32>
    %75 = vector.broadcast %73 : vector<2x1x256xf32> to vector<2x16x256xf32>
    %76 = arith.mulf %74, %75 : vector<2x16x256xf32>
    %77 = arith.addf %66, %76 : vector<2x16x256xf32>
    %c241_i32 = arith.constant 241 : i32
    %78 = tpu.dynamic_rotate %0 by %c241_i32 dim 1 : vector<2x256xf32>, i32 -> vector<2x256xf32>
    %79 = arith.andi %11, %13 : vector<1x256xi1>
    %cst_14 = arith.constant 0.000000e+00 : f32
    %80 = vector.shape_cast %79 : vector<1x256xi1> to vector<1x256xi1>
    %81 = vector.broadcast %80 : vector<1x256xi1> to vector<2x256xi1>
    %82 = vector.broadcast %cst_14 : f32 to vector<2x256xf32>
    %83 = arith.select %81, %78, %82 : vector<2x256xi1>, vector<2x256xf32>
    %84 = vector.extract_strided_slice %1 {offsets = [0, 0, 6], sizes = [1, 16, 1], strides = [1, 1, 1]} : vector<1x16x10xf32> to vector<1x16x1xf32>
    %85 = vector.shape_cast %83 : vector<2x256xf32> to vector<2x1x256xf32>
    %86 = vector.broadcast %84 : vector<1x16x1xf32> to vector<2x16x256xf32>
    %87 = vector.broadcast %85 : vector<2x1x256xf32> to vector<2x16x256xf32>
    %88 = arith.mulf %86, %87 : vector<2x16x256xf32>
    %89 = arith.addf %77, %88 : vector<2x16x256xf32>
    %c240_i32 = arith.constant 240 : i32
    %90 = tpu.dynamic_rotate %0 by %c240_i32 dim 1 : vector<2x256xf32>, i32 -> vector<2x256xf32>
    %cst_15 = arith.constant 0.000000e+00 : f32
    %91 = vector.shape_cast %11 : vector<1x256xi1> to vector<1x256xi1>
    %92 = vector.broadcast %91 : vector<1x256xi1> to vector<2x256xi1>
    %93 = vector.broadcast %cst_15 : f32 to vector<2x256xf32>
    %94 = arith.select %92, %90, %93 : vector<2x256xi1>, vector<2x256xf32>
    %95 = vector.extract_strided_slice %1 {offsets = [0, 0, 7], sizes = [1, 16, 1], strides = [1, 1, 1]} : vector<1x16x10xf32> to vector<1x16x1xf32>
    %96 = vector.shape_cast %94 : vector<2x256xf32> to vector<2x1x256xf32>
    %97 = vector.broadcast %95 : vector<1x16x1xf32> to vector<2x16x256xf32>
    %98 = vector.broadcast %96 : vector<2x1x256xf32> to vector<2x16x256xf32>
    %99 = arith.mulf %97, %98 : vector<2x16x256xf32>
    %100 = arith.addf %89, %99 : vector<2x16x256xf32>
    %c239_i32 = arith.constant 239 : i32
    %101 = tpu.dynamic_rotate %0 by %c239_i32 dim 1 : vector<2x256xf32>, i32 -> vector<2x256xf32>
    %102 = arith.andi %11, %15 : vector<1x256xi1>
    %cst_16 = arith.constant 0.000000e+00 : f32
    %103 = vector.shape_cast %102 : vector<1x256xi1> to vector<1x256xi1>
    %104 = vector.broadcast %103 : vector<1x256xi1> to vector<2x256xi1>
    %105 = vector.broadcast %cst_16 : f32 to vector<2x256xf32>
    %106 = arith.select %104, %101, %105 : vector<2x256xi1>, vector<2x256xf32>
    %107 = vector.extract_strided_slice %1 {offsets = [0, 0, 8], sizes = [1, 16, 1], strides = [1, 1, 1]} : vector<1x16x10xf32> to vector<1x16x1xf32>
    %108 = vector.shape_cast %106 : vector<2x256xf32> to vector<2x1x256xf32>
    %109 = vector.broadcast %107 : vector<1x16x1xf32> to vector<2x16x256xf32>
    %110 = vector.broadcast %108 : vector<2x1x256xf32> to vector<2x16x256xf32>
    %111 = arith.mulf %109, %110 : vector<2x16x256xf32>
    %112 = arith.addf %100, %111 : vector<2x16x256xf32>
    %113 = vector.extract_strided_slice %1 {offsets = [0, 0, 9], sizes = [1, 16, 1], strides = [1, 1, 1]} : vector<1x16x10xf32> to vector<1x16x1xf32>
    %114 = vector.broadcast %113 : vector<1x16x1xf32> to vector<2x16x256xf32>
    %115 = arith.addf %112, %114 : vector<2x16x256xf32>
    %cst_17 = arith.constant 0.000000e+00 : f32
    %116 = vector.broadcast %cst_17 : f32 to vector<2x16x256xf32>
    %117 = arith.maximumf %115, %116 : vector<2x16x256xf32>
    %cst_18 = arith.constant dense<0.000000e+00> : vector<2x16xf32>
    %118 = vector.multi_reduction <add>, %117, %cst_18 [2] : vector<2x16x256xf32> to vector<2x16xf32>
    %cst_19 = arith.constant 0.000000e+00 : f32
    %119 = vector.broadcast %cst_19 : f32 to vector<6x16xf32>
    %120 = tpu.concatenate %118, %119 in 0 : vector<2x16xf32>, vector<6x16xf32> -> vector<8x16xf32>
    %121 = vector.extract_strided_slice %2 {offsets = [16, 0], sizes = [1, 128], strides = [1, 1]} : vector<17x128xf32> to vector<1x128xf32>
    %122 = vector.extract_strided_slice %120 {offsets = [0, 0], sizes = [8, 1], strides = [1, 1]} : vector<8x16xf32> to vector<8x1xf32>
    %123 = vector.extract_strided_slice %2 {offsets = [0, 0], sizes = [1, 128], strides = [1, 1]} : vector<17x128xf32> to vector<1x128xf32>
    %124 = vector.broadcast %122 : vector<8x1xf32> to vector<8x128xf32>
    %125 = vector.broadcast %123 : vector<1x128xf32> to vector<8x128xf32>
    %126 = arith.mulf %124, %125 : vector<8x128xf32>
    %127 = vector.broadcast %121 : vector<1x128xf32> to vector<8x128xf32>
    %128 = arith.addf %127, %126 : vector<8x128xf32>
    %129 = vector.extract_strided_slice %120 {offsets = [0, 1], sizes = [8, 1], strides = [1, 1]} : vector<8x16xf32> to vector<8x1xf32>
    %130 = vector.extract_strided_slice %2 {offsets = [1, 0], sizes = [1, 128], strides = [1, 1]} : vector<17x128xf32> to vector<1x128xf32>
    %131 = vector.broadcast %129 : vector<8x1xf32> to vector<8x128xf32>
    %132 = vector.broadcast %130 : vector<1x128xf32> to vector<8x128xf32>
    %133 = arith.mulf %131, %132 : vector<8x128xf32>
    %134 = arith.addf %128, %133 : vector<8x128xf32>
    %135 = vector.extract_strided_slice %120 {offsets = [0, 2], sizes = [8, 1], strides = [1, 1]} : vector<8x16xf32> to vector<8x1xf32>
    %136 = vector.extract_strided_slice %2 {offsets = [2, 0], sizes = [1, 128], strides = [1, 1]} : vector<17x128xf32> to vector<1x128xf32>
    %137 = vector.broadcast %135 : vector<8x1xf32> to vector<8x128xf32>
    %138 = vector.broadcast %136 : vector<1x128xf32> to vector<8x128xf32>
    %139 = arith.mulf %137, %138 : vector<8x128xf32>
    %140 = arith.addf %134, %139 : vector<8x128xf32>
    %141 = vector.extract_strided_slice %120 {offsets = [0, 3], sizes = [8, 1], strides = [1, 1]} : vector<8x16xf32> to vector<8x1xf32>
    %142 = vector.extract_strided_slice %2 {offsets = [3, 0], sizes = [1, 128], strides = [1, 1]} : vector<17x128xf32> to vector<1x128xf32>
    %143 = vector.broadcast %141 : vector<8x1xf32> to vector<8x128xf32>
    %144 = vector.broadcast %142 : vector<1x128xf32> to vector<8x128xf32>
    %145 = arith.mulf %143, %144 : vector<8x128xf32>
    %146 = arith.addf %140, %145 : vector<8x128xf32>
    %147 = vector.extract_strided_slice %120 {offsets = [0, 4], sizes = [8, 1], strides = [1, 1]} : vector<8x16xf32> to vector<8x1xf32>
    %148 = vector.extract_strided_slice %2 {offsets = [4, 0], sizes = [1, 128], strides = [1, 1]} : vector<17x128xf32> to vector<1x128xf32>
    %149 = vector.broadcast %147 : vector<8x1xf32> to vector<8x128xf32>
    %150 = vector.broadcast %148 : vector<1x128xf32> to vector<8x128xf32>
    %151 = arith.mulf %149, %150 : vector<8x128xf32>
    %152 = arith.addf %146, %151 : vector<8x128xf32>
    %153 = vector.extract_strided_slice %120 {offsets = [0, 5], sizes = [8, 1], strides = [1, 1]} : vector<8x16xf32> to vector<8x1xf32>
    %154 = vector.extract_strided_slice %2 {offsets = [5, 0], sizes = [1, 128], strides = [1, 1]} : vector<17x128xf32> to vector<1x128xf32>
    %155 = vector.broadcast %153 : vector<8x1xf32> to vector<8x128xf32>
    %156 = vector.broadcast %154 : vector<1x128xf32> to vector<8x128xf32>
    %157 = arith.mulf %155, %156 : vector<8x128xf32>
    %158 = arith.addf %152, %157 : vector<8x128xf32>
    %159 = vector.extract_strided_slice %120 {offsets = [0, 6], sizes = [8, 1], strides = [1, 1]} : vector<8x16xf32> to vector<8x1xf32>
    %160 = vector.extract_strided_slice %2 {offsets = [6, 0], sizes = [1, 128], strides = [1, 1]} : vector<17x128xf32> to vector<1x128xf32>
    %161 = vector.broadcast %159 : vector<8x1xf32> to vector<8x128xf32>
    %162 = vector.broadcast %160 : vector<1x128xf32> to vector<8x128xf32>
    %163 = arith.mulf %161, %162 : vector<8x128xf32>
    %164 = arith.addf %158, %163 : vector<8x128xf32>
    %165 = vector.extract_strided_slice %120 {offsets = [0, 7], sizes = [8, 1], strides = [1, 1]} : vector<8x16xf32> to vector<8x1xf32>
    %166 = vector.extract_strided_slice %2 {offsets = [7, 0], sizes = [1, 128], strides = [1, 1]} : vector<17x128xf32> to vector<1x128xf32>
    %167 = vector.broadcast %165 : vector<8x1xf32> to vector<8x128xf32>
    %168 = vector.broadcast %166 : vector<1x128xf32> to vector<8x128xf32>
    %169 = arith.mulf %167, %168 : vector<8x128xf32>
    %170 = arith.addf %164, %169 : vector<8x128xf32>
    %171 = vector.extract_strided_slice %120 {offsets = [0, 8], sizes = [8, 1], strides = [1, 1]} : vector<8x16xf32> to vector<8x1xf32>
    %172 = vector.extract_strided_slice %2 {offsets = [8, 0], sizes = [1, 128], strides = [1, 1]} : vector<17x128xf32> to vector<1x128xf32>
    %173 = vector.broadcast %171 : vector<8x1xf32> to vector<8x128xf32>
    %174 = vector.broadcast %172 : vector<1x128xf32> to vector<8x128xf32>
    %175 = arith.mulf %173, %174 : vector<8x128xf32>
    %176 = arith.addf %170, %175 : vector<8x128xf32>
    %177 = vector.extract_strided_slice %120 {offsets = [0, 9], sizes = [8, 1], strides = [1, 1]} : vector<8x16xf32> to vector<8x1xf32>
    %178 = vector.extract_strided_slice %2 {offsets = [9, 0], sizes = [1, 128], strides = [1, 1]} : vector<17x128xf32> to vector<1x128xf32>
    %179 = vector.broadcast %177 : vector<8x1xf32> to vector<8x128xf32>
    %180 = vector.broadcast %178 : vector<1x128xf32> to vector<8x128xf32>
    %181 = arith.mulf %179, %180 : vector<8x128xf32>
    %182 = arith.addf %176, %181 : vector<8x128xf32>
    %183 = vector.extract_strided_slice %120 {offsets = [0, 10], sizes = [8, 1], strides = [1, 1]} : vector<8x16xf32> to vector<8x1xf32>
    %184 = vector.extract_strided_slice %2 {offsets = [10, 0], sizes = [1, 128], strides = [1, 1]} : vector<17x128xf32> to vector<1x128xf32>
    %185 = vector.broadcast %183 : vector<8x1xf32> to vector<8x128xf32>
    %186 = vector.broadcast %184 : vector<1x128xf32> to vector<8x128xf32>
    %187 = arith.mulf %185, %186 : vector<8x128xf32>
    %188 = arith.addf %182, %187 : vector<8x128xf32>
    %189 = vector.extract_strided_slice %120 {offsets = [0, 11], sizes = [8, 1], strides = [1, 1]} : vector<8x16xf32> to vector<8x1xf32>
    %190 = vector.extract_strided_slice %2 {offsets = [11, 0], sizes = [1, 128], strides = [1, 1]} : vector<17x128xf32> to vector<1x128xf32>
    %191 = vector.broadcast %189 : vector<8x1xf32> to vector<8x128xf32>
    %192 = vector.broadcast %190 : vector<1x128xf32> to vector<8x128xf32>
    %193 = arith.mulf %191, %192 : vector<8x128xf32>
    %194 = arith.addf %188, %193 : vector<8x128xf32>
    %195 = vector.extract_strided_slice %120 {offsets = [0, 12], sizes = [8, 1], strides = [1, 1]} : vector<8x16xf32> to vector<8x1xf32>
    %196 = vector.extract_strided_slice %2 {offsets = [12, 0], sizes = [1, 128], strides = [1, 1]} : vector<17x128xf32> to vector<1x128xf32>
    %197 = vector.broadcast %195 : vector<8x1xf32> to vector<8x128xf32>
    %198 = vector.broadcast %196 : vector<1x128xf32> to vector<8x128xf32>
    %199 = arith.mulf %197, %198 : vector<8x128xf32>
    %200 = arith.addf %194, %199 : vector<8x128xf32>
    %201 = vector.extract_strided_slice %120 {offsets = [0, 13], sizes = [8, 1], strides = [1, 1]} : vector<8x16xf32> to vector<8x1xf32>
    %202 = vector.extract_strided_slice %2 {offsets = [13, 0], sizes = [1, 128], strides = [1, 1]} : vector<17x128xf32> to vector<1x128xf32>
    %203 = vector.broadcast %201 : vector<8x1xf32> to vector<8x128xf32>
    %204 = vector.broadcast %202 : vector<1x128xf32> to vector<8x128xf32>
    %205 = arith.mulf %203, %204 : vector<8x128xf32>
    %206 = arith.addf %200, %205 : vector<8x128xf32>
    %207 = vector.extract_strided_slice %120 {offsets = [0, 14], sizes = [8, 1], strides = [1, 1]} : vector<8x16xf32> to vector<8x1xf32>
    %208 = vector.extract_strided_slice %2 {offsets = [14, 0], sizes = [1, 128], strides = [1, 1]} : vector<17x128xf32> to vector<1x128xf32>
    %209 = vector.broadcast %207 : vector<8x1xf32> to vector<8x128xf32>
    %210 = vector.broadcast %208 : vector<1x128xf32> to vector<8x128xf32>
    %211 = arith.mulf %209, %210 : vector<8x128xf32>
    %212 = arith.addf %206, %211 : vector<8x128xf32>
    %213 = vector.extract_strided_slice %120 {offsets = [0, 15], sizes = [8, 1], strides = [1, 1]} : vector<8x16xf32> to vector<8x1xf32>
    %214 = vector.extract_strided_slice %2 {offsets = [15, 0], sizes = [1, 128], strides = [1, 1]} : vector<17x128xf32> to vector<1x128xf32>
    %215 = vector.broadcast %213 : vector<8x1xf32> to vector<8x128xf32>
    %216 = vector.broadcast %214 : vector<1x128xf32> to vector<8x128xf32>
    %217 = arith.mulf %215, %216 : vector<8x128xf32>
    %218 = arith.addf %212, %217 : vector<8x128xf32>
    %c0_20 = arith.constant 0 : index
    %c0_21 = arith.constant 0 : index
    %219 = vector.load %arg3[%c0_20, %c0_21] : memref<8x128xf32, #tpu.memory_space<vmem>>, vector<8x128xf32>
    tpu.vector_store %arg3[%c0_20, %c0_21], %218 {strides = array<i32>} : memref<8x128xf32, #tpu.memory_space<vmem>>, vector<8x128xf32>,
    return
  }
}

</mosaic_0001>

<llo_original>
// kernel: cnn_forward.1
$region0: #{cnn_forward.1}
  #allocation0 [shape = 'u32[]', space=smem, size = 0x4, offset = 0x4, fixed_abs, tag = 'smem constant byte address 0x4 - core index']
  #allocation1 [shape = 'u32[144,128]{1,0:T(1,128)}', space=vmem, size = 0x12000, scoped, tag = 'internal scratch']
  %s0 = inlined_call_operand.vmem [shape: f32[2,256], index: 0, kind: input, shape index: {}]
  %s1 = inlined_call_operand.vmem [shape: f32[1,16,10], index: 1, kind: input, shape index: {}]
  %s2 = inlined_call_operand.vmem [shape: f32[17,128], index: 2, kind: input, shape index: {}]
  %s3 = inlined_call_operand.vmem [shape: f32[8,128], index: 3, kind: output, shape index: {}]
  %s4 = sld [smem:[#allocation0]]
  $region22: #{cnn_forward.1} parent=0
    _
  %s6 = ssub.s32 1, %s4
  %s7 = scalar_select 0, %s6, %s4
  // Predicated region
  $region2: #{cnn_forward.1} parent=0 // pred_check
    _
  $region3: #{cnn_forward.1} parent=0 // pred_check_branch
    %9 = sbr.rel (0) target = $region5
  $region4: #{cnn_forward.1} parent=0 // pred_region
    _
  $region5: #{cnn_forward.1} parent=0 // pred_fallthru
    _
  // Predicated region
  $region6: #{cnn_forward.1} parent=0 // pred_check
    _
  $region7: #{cnn_forward.1} parent=0 // pred_check_branch
    %11 = sbr.rel (0) target = $region9
  $region8: #{cnn_forward.1} parent=0 // pred_region
    _
  $region9: #{cnn_forward.1} parent=0 // pred_fallthru
    _
  // Predicated region
  $region10: #{cnn_forward.1} parent=0 // pred_check
    _
  $region11: #{cnn_forward.1} parent=0 // pred_check_branch
    %13 = sbr.rel (0) target = $region13
  $region12: #{cnn_forward.1} parent=0 // pred_region
    _
  $region13: #{cnn_forward.1} parent=0 // pred_fallthru
    _
  %v14 = vld [vmem:[%s0] sm:$0xf]
  %v15 = vld [vmem:[%s1] sm:$0xff]
  %v16 = vld [vmem:[%s1 + $0x8] sm:$0xff]
  %v17 = vld [vmem:[%s2] sm:$0xff]
  %v18 = vld [vmem:[%s2 + $0x8] sm:$0xff]
  %v19 = vld [vmem:[%s2 + $0x10] sm:$0x1]
  %v20 = vlaneseq
  %v21 = vand.u32 %v20, 127
  %v22 = vadd.s32 %v21, 128
  %v23 = vshra.s32 %v21, 4
  %v24 = vshra.s32 %v22, 4
  %v25 = vand.u32 %v21, 15
  %v26 = vand.u32 %v22, 15
  %vm27 = vcmp.ge.s32.totalorder %v23, 1
  %vm28 = vcmp.ge.s32.totalorder %v24, 1
  %vm29 = vcmp.le.s32.totalorder %v23, 14
  %vm30 = vcmp.le.s32.totalorder %v24, 14
  %vm31 = vcmp.ge.s32.totalorder %v25, 1
  %vm32 = vcmp.ge.s32.totalorder %v26, 1
  %vm33 = vcmp.le.s32.totalorder %v25, 14
  %vm34 = vcmp.le.s32.totalorder %v26, 14
  %v37 = vunpack.c.l.s4 1983009808
  %v38 = vunpack.c.0.s8 %v37
  %v39 = vlaneseq
  %v40 = vshrl.u32 %v39, 7
  %v41 = vsub.s32 %v38, %v40
  %v42 = vrot.slane %v14, %v41
  %v43 = vcombine.high %v42, %v42
  %46 = vrot.lane.b32.xlu0 %v42, 17
  %v47 = vpop.permute.xlu0 %46
  %48 = vrot.lane.b32.xlu0 %v43, 17
  %v49 = vpop.permute.xlu0 %48
  %vm50 = vcmp.lt.s32.totalorder %v21, 17
  %v51 = vsel %vm50, %v47, %v49
  %v52 = vsel %vm50, %v49, %v47
  %vm53 = vmand %vm27, %vm31
  %vm54 = vmand %vm28, %vm32
  %v55 = vsel %vm53, 1, 0
  %v56 = vsel %vm54, 1, 0
  %vm57 = vcmp.eq.s32.totalorder %v55, 1
  %vm58 = vcmp.eq.s32.totalorder %v56, 1
  %v59 = vsel %vm57, %v52, 0.0
  %v60 = vsel %vm58, %v51, 0.0
  %v63 = vcombine.low %v59, %v60
  %v65 = vunpack.c.l.s4 1966171168
  %v66 = vunpack.c.0.s8 %v65
  %v67 = vlaneseq
  %v68 = vshrl.u32 %v67, 7
  %v69 = vsub.s32 %v66, %v68
  %v70 = vrot.slane %v63, %v69
  %v71 = vcombine.high %v70, %v70
  %v73 = vunpack.c.l.s4 1966171168
  %v74 = vunpack.c.0.s8 %v73
  %v75 = vlaneseq
  %v76 = vshrl.u32 %v75, 7
  %v77 = vsub.s32 %v74, %v76
  %v78 = vrot.slane %v70, %v77
  %v80 = vunpack.c.l.s4 1966171168
  %v81 = vunpack.c.0.s8 %v80
  %v82 = vlaneseq
  %v83 = vshrl.u32 %v82, 7
  %v84 = vsub.s32 %v81, %v83
  %v85 = vrot.slane %v71, %v84
  %87 = vset.pattern.permute.xlu0 0
  %88 = vperm.xlu0 %87, %v15
  %v89 = vpop.permute.xlu0 %88
  %92 = vset.pattern.permute.xlu0 0
  %93 = vperm.xlu0 %92, %v16
  %v94 = vpop.permute.xlu0 %93
  %v96 = vlaneseq
  %v97 = vshrl.u32 %v96, 7
  %v98 = vsub.s32 0, %v97
  %v99 = vrot.slane %v78, %v98
  %v100 = vlaneseq
  %v101 = vshrl.u32 %v100, 7
  %v102 = vsub.s32 1, %v101
  %v103 = vrot.slane %v78, %v102
  %v104 = vlaneseq
  %v105 = vshrl.u32 %v104, 7
  %v106 = vsub.s32 0, %v105
  %v107 = vrot.slane %v85, %v106
  %v108 = vlaneseq
  %v109 = vshrl.u32 %v108, 7
  %v110 = vsub.s32 1, %v109
  %v111 = vrot.slane %v85, %v110
  %v116 = vmul.f32 %v89, %v99
  %v117 = vmul.f32 %v89, %v103
  %v118 = vmul.f32 %v94, %v99
  %v119 = vmul.f32 %v94, %v103
  %v120 = vmul.f32 %v89, %v107
  %v121 = vmul.f32 %v89, %v111
  %v122 = vmul.f32 %v94, %v107
  %v123 = vmul.f32 %v94, %v111
  %124 = vrot.lane.b32.xlu0 %v42, 16
  %v125 = vpop.permute.xlu0 %124
  %126 = vrot.lane.b32.xlu0 %v43, 16
  %v127 = vpop.permute.xlu0 %126
  %vm128 = vcmp.lt.s32.totalorder %v21, 16
  %v129 = vsel %vm128, %v125, %v127
  %v130 = vsel %vm128, %v127, %v125
  %v131 = vsel %vm27, 1, 0
  %v132 = vsel %vm28, 1, 0
  %vm133 = vcmp.eq.s32.totalorder %v131, 1
  %vm134 = vcmp.eq.s32.totalorder %v132, 1
  %v135 = vsel %vm133, %v130, 0.0
  %v136 = vsel %vm134, %v129, 0.0
  %v139 = vcombine.low %v135, %v136
  %v141 = vunpack.c.l.s4 1966171168
  %v142 = vunpack.c.0.s8 %v141
  %v143 = vlaneseq
  %v144 = vshrl.u32 %v143, 7
  %v145 = vsub.s32 %v142, %v144
  %v146 = vrot.slane %v139, %v145
  %v147 = vcombine.high %v146, %v146
  %v149 = vunpack.c.l.s4 1966171168
  %v150 = vunpack.c.0.s8 %v149
  %v151 = vlaneseq
  %v152 = vshrl.u32 %v151, 7
  %v153 = vsub.s32 %v150, %v152
  %v154 = vrot.slane %v146, %v153
  %v156 = vunpack.c.l.s4 1966171168
  %v157 = vunpack.c.0.s8 %v156
  %v158 = vlaneseq
  %v159 = vshrl.u32 %v158, 7
  %v160 = vsub.s32 %v157, %v159
  %v161 = vrot.slane %v147, %v160
  %162 = vset.pattern.permute.xlu0 1
  %163 = vperm.xlu0 %162, %v15
  %v164 = vpop.permute.xlu0 %163
  %166 = vset.pattern.permute.xlu0 1
  %167 = vperm.xlu0 %166, %v16
  %v168 = vpop.permute.xlu0 %167
  %v170 = vlaneseq
  %v171 = vshrl.u32 %v170, 7
  %v172 = vsub.s32 0, %v171
  %v173 = vrot.slane %v154, %v172
  %v174 = vlaneseq
  %v175 = vshrl.u32 %v174, 7
  %v176 = vsub.s32 1, %v175
  %v177 = vrot.slane %v154, %v176
  %v178 = vlaneseq
  %v179 = vshrl.u32 %v178, 7
  %v180 = vsub.s32 0, %v179
  %v181 = vrot.slane %v161, %v180
  %v182 = vlaneseq
  %v183 = vshrl.u32 %v182, 7
  %v184 = vsub.s32 1, %v183
  %v185 = vrot.slane %v161, %v184
  %v190 = vmul.f32 %v164, %v173
  %v191 = vmul.f32 %v164, %v177
  %v192 = vmul.f32 %v168, %v173
  %v193 = vmul.f32 %v168, %v177
  %v194 = vmul.f32 %v164, %v181
  %v195 = vmul.f32 %v164, %v185
  %v196 = vmul.f32 %v168, %v181
  %v197 = vmul.f32 %v168, %v185
  %v198 = vadd.f32 %v116, %v190
  %v199 = vadd.f32 %v117, %v191
  %v200 = vadd.f32 %v118, %v192
  %v201 = vadd.f32 %v119, %v193
  %v202 = vadd.f32 %v120, %v194
  %v203 = vadd.f32 %v121, %v195
  %v204 = vadd.f32 %v122, %v196
  %v205 = vadd.f32 %v123, %v197
  %206 = vrot.lane.b32.xlu0 %v42, 15
  %v207 = vpop.permute.xlu0 %206
  %208 = vrot.lane.b32.xlu0 %v43, 15
  %v209 = vpop.permute.xlu0 %208
  %vm210 = vcmp.lt.s32.totalorder %v21, 15
  %v211 = vsel %vm210, %v207, %v209
  %v212 = vsel %vm210, %v209, %v207
  %vm213 = vmand %vm27, %vm33
  %vm214 = vmand %vm28, %vm34
  %v215 = vsel %vm213, 1, 0
  %v216 = vsel %vm214, 1, 0
  %vm217 = vcmp.eq.s32.totalorder %v215, 1
  %vm218 = vcmp.eq.s32.totalorder %v216, 1
  %v219 = vsel %vm217, %v212, 0.0
  %v220 = vsel %vm218, %v211, 0.0
  %v223 = vcombine.low %v219, %v220
  %v225 = vunpack.c.l.s4 1966171168
  %v226 = vunpack.c.0.s8 %v225
  %v227 = vlaneseq
  %v228 = vshrl.u32 %v227, 7
  %v229 = vsub.s32 %v226, %v228
  %v230 = vrot.slane %v223, %v229
  %v231 = vcombine.high %v230, %v230
  %v233 = vunpack.c.l.s4 1966171168
  %v234 = vunpack.c.0.s8 %v233
  %v235 = vlaneseq
  %v236 = vshrl.u32 %v235, 7
  %v237 = vsub.s32 %v234, %v236
  %v238 = vrot.slane %v230, %v237
  %v240 = vunpack.c.l.s4 1966171168
  %v241 = vunpack.c.0.s8 %v240
  %v242 = vlaneseq
  %v243 = vshrl.u32 %v242, 7
  %v244 = vsub.s32 %v241, %v243
  %v245 = vrot.slane %v231, %v244
  %246 = vset.pattern.permute.xlu0 2
  %247 = vperm.xlu0 %246, %v15
  %v248 = vpop.permute.xlu0 %247
  %250 = vset.pattern.permute.xlu0 2
  %251 = vperm.xlu0 %250, %v16
  %v252 = vpop.permute.xlu0 %251
  %v254 = vlaneseq
  %v255 = vshrl.u32 %v254, 7
  %v256 = vsub.s32 0, %v255
  %v257 = vrot.slane %v238, %v256
  %v258 = vlaneseq
  %v259 = vshrl.u32 %v258, 7
  %v260 = vsub.s32 1, %v259
  %v261 = vrot.slane %v238, %v260
  %v262 = vlaneseq
  %v263 = vshrl.u32 %v262, 7
  %v264 = vsub.s32 0, %v263
  %v265 = vrot.slane %v245, %v264
  %v266 = vlaneseq
  %v267 = vshrl.u32 %v266, 7
  %v268 = vsub.s32 1, %v267
  %v269 = vrot.slane %v245, %v268
  %v274 = vmul.f32 %v248, %v257
  %v275 = vmul.f32 %v248, %v261
  %v276 = vmul.f32 %v252, %v257
  %v277 = vmul.f32 %v252, %v261
  %v278 = vmul.f32 %v248, %v265
  %v279 = vmul.f32 %v248, %v269
  %v280 = vmul.f32 %v252, %v265
  %v281 = vmul.f32 %v252, %v269
  %v282 = vadd.f32 %v198, %v274
  %v283 = vadd.f32 %v199, %v275
  %v284 = vadd.f32 %v200, %v276
  %v285 = vadd.f32 %v201, %v277
  %v286 = vadd.f32 %v202, %v278
  %v287 = vadd.f32 %v203, %v279
  %v288 = vadd.f32 %v204, %v280
  %v289 = vadd.f32 %v205, %v281
  %290 = vrot.lane.b32.xlu0 %v42, 1
  %v291 = vpop.permute.xlu0 %290
  %292 = vrot.lane.b32.xlu0 %v43, 1
  %v293 = vpop.permute.xlu0 %292
  %vm294 = vcmp.lt.s32.totalorder %v21, 1
  %v295 = vsel %vm294, %v291, %v293
  %v296 = vsel %vm294, %v293, %v291
  %v297 = vsel %vm31, 1, 0
  %v298 = vsel %vm32, 1, 0
  %vm299 = vcmp.eq.s32.totalorder %v297, 1
  %vm300 = vcmp.eq.s32.totalorder %v298, 1
  %v301 = vsel %vm299, %v296, 0.0
  %v302 = vsel %vm300, %v295, 0.0
  %v305 = vcombine.low %v301, %v302
  %v307 = vunpack.c.l.s4 1966171168
  %v308 = vunpack.c.0.s8 %v307
  %v309 = vlaneseq
  %v310 = vshrl.u32 %v309, 7
  %v311 = vsub.s32 %v308, %v310
  %v312 = vrot.slane %v305, %v311
  %v313 = vcombine.high %v312, %v312
  %v315 = vunpack.c.l.s4 1966171168
  %v316 = vunpack.c.0.s8 %v315
  %v317 = vlaneseq
  %v318 = vshrl.u32 %v317, 7
  %v319 = vsub.s32 %v316, %v318
  %v320 = vrot.slane %v312, %v319
  %v322 = vunpack.c.l.s4 1966171168
  %v323 = vunpack.c.0.s8 %v322
  %v324 = vlaneseq
  %v325 = vshrl.u32 %v324, 7
  %v326 = vsub.s32 %v323, %v325
  %v327 = vrot.slane %v313, %v326
  %328 = vset.pattern.permute.xlu0 3
  %329 = vperm.xlu0 %328, %v15
  %v330 = vpop.permute.xlu0 %329
  %332 = vset.pattern.permute.xlu0 3
  %333 = vperm.xlu0 %332, %v16
  %v334 = vpop.permute.xlu0 %333
  %v336 = vlaneseq
  %v337 = vshrl.u32 %v336, 7
  %v338 = vsub.s32 0, %v337
  %v339 = vrot.slane %v320, %v338
  %v340 = vlaneseq
  %v341 = vshrl.u32 %v340, 7
  %v342 = vsub.s32 1, %v341
  %v343 = vrot.slane %v320, %v342
  %v344 = vlaneseq
  %v345 = vshrl.u32 %v344, 7
  %v346 = vsub.s32 0, %v345
  %v347 = vrot.slane %v327, %v346
  %v348 = vlaneseq
  %v349 = vshrl.u32 %v348, 7
  %v350 = vsub.s32 1, %v349
  %v351 = vrot.slane %v327, %v350
  %v356 = vmul.f32 %v330, %v339
  %v357 = vmul.f32 %v330, %v343
  %v358 = vmul.f32 %v334, %v339
  %v359 = vmul.f32 %v334, %v343
  %v360 = vmul.f32 %v330, %v347
  %v361 = vmul.f32 %v330, %v351
  %v362 = vmul.f32 %v334, %v347
  %v363 = vmul.f32 %v334, %v351
  %v364 = vadd.f32 %v282, %v356
  %v365 = vadd.f32 %v283, %v357
  %v366 = vadd.f32 %v284, %v358
  %v367 = vadd.f32 %v285, %v359
  %v368 = vadd.f32 %v286, %v360
  %v369 = vadd.f32 %v287, %v361
  %v370 = vadd.f32 %v288, %v362
  %v371 = vadd.f32 %v289, %v363
  %v373 = vunpack.c.l.s4 1966171168
  %v374 = vunpack.c.0.s8 %v373
  %v375 = vlaneseq
  %v376 = vshrl.u32 %v375, 7
  %v377 = vsub.s32 %v374, %v376
  %v378 = vrot.slane %v14, %v377
  %v379 = vcombine.high %v378, %v378
  %380 = vset.pattern.permute.xlu0 4
  %381 = vperm.xlu0 %380, %v15
  %v382 = vpop.permute.xlu0 %381
  %384 = vset.pattern.permute.xlu0 4
  %385 = vperm.xlu0 %384, %v16
  %v386 = vpop.permute.xlu0 %385
  %v388 = vlaneseq
  %v389 = vshrl.u32 %v388, 7
  %v390 = vsub.s32 0, %v389
  %v391 = vrot.slane %v378, %v390
  %v392 = vlaneseq
  %v393 = vshrl.u32 %v392, 7
  %v394 = vsub.s32 1, %v393
  %v395 = vrot.slane %v378, %v394
  %v396 = vlaneseq
  %v397 = vshrl.u32 %v396, 7
  %v398 = vsub.s32 0, %v397
  %v399 = vrot.slane %v379, %v398
  %v400 = vlaneseq
  %v401 = vshrl.u32 %v400, 7
  %v402 = vsub.s32 1, %v401
  %v403 = vrot.slane %v379, %v402
  %v408 = vmul.f32 %v382, %v391
  %v409 = vmul.f32 %v382, %v395
  %v410 = vmul.f32 %v386, %v391
  %v411 = vmul.f32 %v386, %v395
  %v412 = vmul.f32 %v382, %v399
  %v413 = vmul.f32 %v382, %v403
  %v414 = vmul.f32 %v386, %v399
  %v415 = vmul.f32 %v386, %v403
  %v416 = vadd.f32 %v364, %v408
  %v417 = vadd.f32 %v365, %v409
  %v418 = vadd.f32 %v366, %v410
  %v419 = vadd.f32 %v367, %v411
  %v420 = vadd.f32 %v368, %v412
  %v421 = vadd.f32 %v369, %v413
  %v422 = vadd.f32 %v370, %v414
  %v423 = vadd.f32 %v371, %v415
  %424 = vrot.lane.b32.xlu0 %v42, 127
  %v425 = vpop.permute.xlu0 %424
  %426 = vrot.lane.b32.xlu0 %v43, 127
  %v427 = vpop.permute.xlu0 %426
  %vm428 = vcmp.lt.s32.totalorder %v21, 127
  %v429 = vsel %vm428, %v425, %v427
  %v430 = vsel %vm428, %v427, %v425
  %v431 = vsel %vm33, 1, 0
  %v432 = vsel %vm34, 1, 0
  %vm433 = vcmp.eq.s32.totalorder %v431, 1
  %vm434 = vcmp.eq.s32.totalorder %v432, 1
  %v435 = vsel %vm433, %v429, 0.0
  %v436 = vsel %vm434, %v430, 0.0
  %v439 = vcombine.low %v435, %v436
  %v441 = vunpack.c.l.s4 1966171168
  %v442 = vunpack.c.0.s8 %v441
  %v443 = vlaneseq
  %v444 = vshrl.u32 %v443, 7
  %v445 = vsub.s32 %v442, %v444
  %v446 = vrot.slane %v439, %v445
  %v447 = vcombine.high %v446, %v446
  %v449 = vunpack.c.l.s4 1966171168
  %v450 = vunpack.c.0.s8 %v449
  %v451 = vlaneseq
  %v452 = vshrl.u32 %v451, 7
  %v453 = vsub.s32 %v450, %v452
  %v454 = vrot.slane %v446, %v453
  %v456 = vunpack.c.l.s4 1966171168
  %v457 = vunpack.c.0.s8 %v456
  %v458 = vlaneseq
  %v459 = vshrl.u32 %v458, 7
  %v460 = vsub.s32 %v457, %v459
  %v461 = vrot.slane %v447, %v460
  %462 = vset.pattern.permute.xlu0 5
  %463 = vperm.xlu0 %462, %v15
  %v464 = vpop.permute.xlu0 %463
  %466 = vset.pattern.permute.xlu0 5
  %467 = vperm.xlu0 %466, %v16
  %v468 = vpop.permute.xlu0 %467
  %v470 = vlaneseq
  %v471 = vshrl.u32 %v470, 7
  %v472 = vsub.s32 0, %v471
  %v473 = vrot.slane %v454, %v472
  %v474 = vlaneseq
  %v475 = vshrl.u32 %v474, 7
  %v476 = vsub.s32 1, %v475
  %v477 = vrot.slane %v454, %v476
  %v478 = vlaneseq
  %v479 = vshrl.u32 %v478, 7
  %v480 = vsub.s32 0, %v479
  %v481 = vrot.slane %v461, %v480
  %v482 = vlaneseq
  %v483 = vshrl.u32 %v482, 7
  %v484 = vsub.s32 1, %v483
  %v485 = vrot.slane %v461, %v484
  %v490 = vmul.f32 %v464, %v473
  %v491 = vmul.f32 %v464, %v477
  %v492 = vmul.f32 %v468, %v473
  %v493 = vmul.f32 %v468, %v477
  %v494 = vmul.f32 %v464, %v481
  %v495 = vmul.f32 %v464, %v485
  %v496 = vmul.f32 %v468, %v481
  %v497 = vmul.f32 %v468, %v485
  %v498 = vadd.f32 %v416, %v490
  %v499 = vadd.f32 %v417, %v491
  %v500 = vadd.f32 %v418, %v492
  %v501 = vadd.f32 %v419, %v493
  %v502 = vadd.f32 %v420, %v494
  %v503 = vadd.f32 %v421, %v495
  %v504 = vadd.f32 %v422, %v496
  %v505 = vadd.f32 %v423, %v497
  %506 = vrot.lane.b32.xlu0 %v42, 113
  %v507 = vpop.permute.xlu0 %506
  %508 = vrot.lane.b32.xlu0 %v43, 113
  %v509 = vpop.permute.xlu0 %508
  %vm510 = vcmp.lt.s32.totalorder %v21, 113
  %v511 = vsel %vm510, %v507, %v509
  %v512 = vsel %vm510, %v509, %v507
  %vm513 = vmand %vm29, %vm31
  %vm514 = vmand %vm30, %vm32
  %v515 = vsel %vm513, 1, 0
  %v516 = vsel %vm514, 1, 0
  %vm517 = vcmp.eq.s32.totalorder %v515, 1
  %vm518 = vcmp.eq.s32.totalorder %v516, 1
  %v519 = vsel %vm517, %v511, 0.0
  %v520 = vsel %vm518, %v512, 0.0
  %v523 = vcombine.low %v519, %v520
  %v525 = vunpack.c.l.s4 1966171168
  %v526 = vunpack.c.0.s8 %v525
  %v527 = vlaneseq
  %v528 = vshrl.u32 %v527, 7
  %v529 = vsub.s32 %v526, %v528
  %v530 = vrot.slane %v523, %v529
  %v531 = vcombine.high %v530, %v530
  %v533 = vunpack.c.l.s4 1966171168
  %v534 = vunpack.c.0.s8 %v533
  %v535 = vlaneseq
  %v536 = vshrl.u32 %v535, 7
  %v537 = vsub.s32 %v534, %v536
  %v538 = vrot.slane %v530, %v537
  %v540 = vunpack.c.l.s4 1966171168
  %v541 = vunpack.c.0.s8 %v540
  %v542 = vlaneseq
  %v543 = vshrl.u32 %v542, 7
  %v544 = vsub.s32 %v541, %v543
  %v545 = vrot.slane %v531, %v544
  %546 = vset.pattern.permute.xlu0 6
  %547 = vperm.xlu0 %546, %v15
  %v548 = vpop.permute.xlu0 %547
  %550 = vset.pattern.permute.xlu0 6
  %551 = vperm.xlu0 %550, %v16
  %v552 = vpop.permute.xlu0 %551
  %v554 = vlaneseq
  %v555 = vshrl.u32 %v554, 7
  %v556 = vsub.s32 0, %v555
  %v557 = vrot.slane %v538, %v556
  %v558 = vlaneseq
  %v559 = vshrl.u32 %v558, 7
  %v560 = vsub.s32 1, %v559
  %v561 = vrot.slane %v538, %v560
  %v562 = vlaneseq
  %v563 = vshrl.u32 %v562, 7
  %v564 = vsub.s32 0, %v563
  %v565 = vrot.slane %v545, %v564
  %v566 = vlaneseq
  %v567 = vshrl.u32 %v566, 7
  %v568 = vsub.s32 1, %v567
  %v569 = vrot.slane %v545, %v568
  %v574 = vmul.f32 %v548, %v557
  %v575 = vmul.f32 %v548, %v561
  %v576 = vmul.f32 %v552, %v557
  %v577 = vmul.f32 %v552, %v561
  %v578 = vmul.f32 %v548, %v565
  %v579 = vmul.f32 %v548, %v569
  %v580 = vmul.f32 %v552, %v565
  %v581 = vmul.f32 %v552, %v569
  %v582 = vadd.f32 %v498, %v574
  %v583 = vadd.f32 %v499, %v575
  %v584 = vadd.f32 %v500, %v576
  %v585 = vadd.f32 %v501, %v577
  %v586 = vadd.f32 %v502, %v578
  %v587 = vadd.f32 %v503, %v579
  %v588 = vadd.f32 %v504, %v580
  %v589 = vadd.f32 %v505, %v581
  %590 = vrot.lane.b32.xlu0 %v42, 112
  %v591 = vpop.permute.xlu0 %590
  %592 = vrot.lane.b32.xlu0 %v43, 112
  %v593 = vpop.permute.xlu0 %592
  %vm594 = vcmp.lt.s32.totalorder %v21, 112
  %v595 = vsel %vm594, %v591, %v593
  %v596 = vsel %vm594, %v593, %v591
  %v597 = vsel %vm29, 1, 0
  %v598 = vsel %vm30, 1, 0
  %vm599 = vcmp.eq.s32.totalorder %v597, 1
  %vm600 = vcmp.eq.s32.totalorder %v598, 1
  %v601 = vsel %vm599, %v595, 0.0
  %v602 = vsel %vm600, %v596, 0.0
  %v605 = vcombine.low %v601, %v602
  %v607 = vunpack.c.l.s4 1966171168
  %v608 = vunpack.c.0.s8 %v607
  %v609 = vlaneseq
  %v610 = vshrl.u32 %v609, 7
  %v611 = vsub.s32 %v608, %v610
  %v612 = vrot.slane %v605, %v611
  %v613 = vcombine.high %v612, %v612
  %v615 = vunpack.c.l.s4 1966171168
  %v616 = vunpack.c.0.s8 %v615
  %v617 = vlaneseq
  %v618 = vshrl.u32 %v617, 7
  %v619 = vsub.s32 %v616, %v618
  %v620 = vrot.slane %v612, %v619
  %v622 = vunpack.c.l.s4 1966171168
  %v623 = vunpack.c.0.s8 %v622
  %v624 = vlaneseq
  %v625 = vshrl.u32 %v624, 7
  %v626 = vsub.s32 %v623, %v625
  %v627 = vrot.slane %v613, %v626
  %628 = vset.pattern.permute.xlu0 7
  %629 = vperm.xlu0 %628, %v15
  %v630 = vpop.permute.xlu0 %629
  %632 = vset.pattern.permute.xlu0 7
  %633 = vperm.xlu0 %632, %v16
  %v634 = vpop.permute.xlu0 %633
  %v636 = vlaneseq
  %v637 = vshrl.u32 %v636, 7
  %v638 = vsub.s32 0, %v637
  %v639 = vrot.slane %v620, %v638
  %v640 = vlaneseq
  %v641 = vshrl.u32 %v640, 7
  %v642 = vsub.s32 1, %v641
  %v643 = vrot.slane %v620, %v642
  %v644 = vlaneseq
  %v645 = vshrl.u32 %v644, 7
  %v646 = vsub.s32 0, %v645
  %v647 = vrot.slane %v627, %v646
  %v648 = vlaneseq
  %v649 = vshrl.u32 %v648, 7
  %v650 = vsub.s32 1, %v649
  %v651 = vrot.slane %v627, %v650
  %v656 = vmul.f32 %v630, %v639
  %v657 = vmul.f32 %v630, %v643
  %v658 = vmul.f32 %v634, %v639
  %v659 = vmul.f32 %v634, %v643
  %v660 = vmul.f32 %v630, %v647
  %v661 = vmul.f32 %v630, %v651
  %v662 = vmul.f32 %v634, %v647
  %v663 = vmul.f32 %v634, %v651
  %v664 = vadd.f32 %v582, %v656
  %v665 = vadd.f32 %v583, %v657
  %v666 = vadd.f32 %v584, %v658
  %v667 = vadd.f32 %v585, %v659
  %v668 = vadd.f32 %v586, %v660
  %v669 = vadd.f32 %v587, %v661
  %v670 = vadd.f32 %v588, %v662
  %v671 = vadd.f32 %v589, %v663
  %672 = vrot.lane.b32.xlu0 %v42, 111
  %v673 = vpop.permute.xlu0 %672
  %674 = vrot.lane.b32.xlu0 %v43, 111
  %v675 = vpop.permute.xlu0 %674
  %vm676 = vcmp.lt.s32.totalorder %v21, 111
  %v677 = vsel %vm676, %v673, %v675
  %v678 = vsel %vm676, %v675, %v673
  %vm679 = vmand %vm29, %vm33
  %vm680 = vmand %vm30, %vm34
  %v681 = vsel %vm679, 1, 0
  %v682 = vsel %vm680, 1, 0
  %vm683 = vcmp.eq.s32.totalorder %v681, 1
  %vm684 = vcmp.eq.s32.totalorder %v682, 1
  %v685 = vsel %vm683, %v677, 0.0
  %v686 = vsel %vm684, %v678, 0.0
  %v689 = vcombine.low %v685, %v686
  %v691 = vunpack.c.l.s4 1966171168
  %v692 = vunpack.c.0.s8 %v691
  %v693 = vlaneseq
  %v694 = vshrl.u32 %v693, 7
  %v695 = vsub.s32 %v692, %v694
  %v696 = vrot.slane %v689, %v695
  %v697 = vcombine.high %v696, %v696
  %v699 = vunpack.c.l.s4 1966171168
  %v700 = vunpack.c.0.s8 %v699
  %v701 = vlaneseq
  %v702 = vshrl.u32 %v701, 7
  %v703 = vsub.s32 %v700, %v702
  %v704 = vrot.slane %v696, %v703
  %v706 = vunpack.c.l.s4 1966171168
  %v707 = vunpack.c.0.s8 %v706
  %v708 = vlaneseq
  %v709 = vshrl.u32 %v708, 7
  %v710 = vsub.s32 %v707, %v709
  %v711 = vrot.slane %v697, %v710
  %712 = vset.pattern.permute.xlu0 8
  %713 = vperm.xlu0 %712, %v15
  %v714 = vpop.permute.xlu0 %713
  %716 = vset.pattern.permute.xlu0 8
  %717 = vperm.xlu0 %716, %v16
  %v718 = vpop.permute.xlu0 %717
  %v720 = vlaneseq
  %v721 = vshrl.u32 %v720, 7
  %v722 = vsub.s32 0, %v721
  %v723 = vrot.slane %v704, %v722
  %v724 = vlaneseq
  %v725 = vshrl.u32 %v724, 7
  %v726 = vsub.s32 1, %v725
  %v727 = vrot.slane %v704, %v726
  %v728 = vlaneseq
  %v729 = vshrl.u32 %v728, 7
  %v730 = vsub.s32 0, %v729
  %v731 = vrot.slane %v711, %v730
  %v732 = vlaneseq
  %v733 = vshrl.u32 %v732, 7
  %v734 = vsub.s32 1, %v733
  %v735 = vrot.slane %v711, %v734
  %v740 = vmul.f32 %v714, %v723
  %v741 = vmul.f32 %v714, %v727
  %v742 = vmul.f32 %v718, %v723
  %v743 = vmul.f32 %v718, %v727
  %v744 = vmul.f32 %v714, %v731
  %v745 = vmul.f32 %v714, %v735
  %v746 = vmul.f32 %v718, %v731
  %v747 = vmul.f32 %v718, %v735
  %v748 = vadd.f32 %v664, %v740
  %v749 = vadd.f32 %v665, %v741
  %v750 = vadd.f32 %v666, %v742
  %v751 = vadd.f32 %v667, %v743
  %v752 = vadd.f32 %v668, %v744
  %v753 = vadd.f32 %v669, %v745
  %v754 = vadd.f32 %v670, %v746
  %v755 = vadd.f32 %v671, %v747
  %756 = vset.pattern.permute.xlu0 9
  %757 = vperm.xlu0 %756, %v15
  %v758 = vpop.permute.xlu0 %757
  %760 = vset.pattern.permute.xlu0 9
  %761 = vperm.xlu0 %760, %v16
  %v762 = vpop.permute.xlu0 %761
  %v764 = vadd.f32 %v748, %v758
  %v765 = vadd.f32 %v749, %v758
  %v766 = vadd.f32 %v750, %v762
  %v767 = vadd.f32 %v751, %v762
  %v768 = vadd.f32 %v752, %v758
  %v769 = vadd.f32 %v753, %v758
  %v770 = vadd.f32 %v754, %v762
  %v771 = vadd.f32 %v755, %v762
  %v772 = vmax.f32 %v764, 0.0
  %v773 = vmax.f32 %v765, 0.0
  %v774 = vmax.f32 %v766, 0.0
  %v775 = vmax.f32 %v767, 0.0
  %v776 = vmax.f32 %v768, 0.0
  %v777 = vmax.f32 %v769, 0.0
  %v778 = vmax.f32 %v770, 0.0
  %v779 = vmax.f32 %v771, 0.0
  %v780 = vadd.f32 %v772, %v773
  %781 = vadd.xlane.f32.xlu0 %v780
  %v782 = vpop.xlane.xlu0 %781
  %v783 = vadd.f32 %v774, %v775
  %784 = vadd.xlane.f32.xlu0 %v783
  %v785 = vpop.xlane.xlu0 %784
  %v786 = vadd.f32 %v776, %v777
  %787 = vadd.xlane.f32.xlu0 %v786
  %v788 = vpop.xlane.xlu0 %787
  %v789 = vadd.f32 %v778, %v779
  %790 = vadd.xlane.f32.xlu0 %v789
  %v791 = vpop.xlane.xlu0 %790
  %v796 = vlaneseq
  %v797 = vshrl.u32 %v796, 7
  %v798 = vsub.s32 %v21, %v797
  %v799 = vrot.slane %v782, %v798
  %v800 = vadd.s32 %v21, 4294967288
  %v801 = vlaneseq
  %v802 = vshrl.u32 %v801, 7
  %v803 = vsub.s32 %v800, %v802
  %v804 = vrot.slane %v785, %v803
  %vm805 = vcmask 130112
  %v806 = vsel %vm805, %v804, %v799
  %v807 = vlaneseq
  %v808 = vshrl.u32 %v807, 7
  %v809 = vsub.s32 %v21, %v808
  %v810 = vrot.slane %v788, %v809
  %v811 = vlaneseq
  %v812 = vshrl.u32 %v811, 7
  %v813 = vsub.s32 %v800, %v812
  %v814 = vrot.slane %v791, %v813
  %v815 = vsel %vm805, %v814, %v810
  %vm816 = vcmask 1041409
  %v817 = vsel %vm816, %v815, %v806
  %vm819 = vcmask 1041408
  %v820 = vsel %vm819, %v817, 0.0
  %822 = vset.pattern.permute.xlu0 0
  %823 = vperm.xlu0 %822, %v820
  %v824 = vpop.permute.xlu0 %823
  %v826 = vlaneseq
  %v827 = vshrl.u32 %v826, 7
  %v828 = vsub.s32 0, %v827
  %v829 = vrot.slane %v17, %v828
  %v830 = vmul.f32 %v824, %v829
  %v831 = vlaneseq
  %v832 = vshrl.u32 %v831, 7
  %v833 = vsub.s32 0, %v832
  %v834 = vrot.slane %v19, %v833
  %v835 = vadd.f32 %v834, %v830
  %836 = vset.pattern.permute.xlu0 1
  %837 = vperm.xlu0 %836, %v820
  %v838 = vpop.permute.xlu0 %837
  %v840 = vlaneseq
  %v841 = vshrl.u32 %v840, 7
  %v842 = vsub.s32 1, %v841
  %v843 = vrot.slane %v17, %v842
  %v844 = vmul.f32 %v838, %v843
  %v845 = vadd.f32 %v835, %v844
  %846 = vset.pattern.permute.xlu0 2
  %847 = vperm.xlu0 %846, %v820
  %v848 = vpop.permute.xlu0 %847
  %v850 = vlaneseq
  %v851 = vshrl.u32 %v850, 7
  %v852 = vsub.s32 2, %v851
  %v853 = vrot.slane %v17, %v852
  %v854 = vmul.f32 %v848, %v853
  %v855 = vadd.f32 %v845, %v854
  %856 = vset.pattern.permute.xlu0 3
  %857 = vperm.xlu0 %856, %v820
  %v858 = vpop.permute.xlu0 %857
  %v860 = vlaneseq
  %v861 = vshrl.u32 %v860, 7
  %v862 = vsub.s32 3, %v861
  %v863 = vrot.slane %v17, %v862
  %v864 = vmul.f32 %v858, %v863
  %v865 = vadd.f32 %v855, %v864
  %866 = vset.pattern.permute.xlu0 4
  %867 = vperm.xlu0 %866, %v820
  %v868 = vpop.permute.xlu0 %867
  %v870 = vlaneseq
  %v871 = vshrl.u32 %v870, 7
  %v872 = vsub.s32 4, %v871
  %v873 = vrot.slane %v17, %v872
  %v874 = vmul.f32 %v868, %v873
  %v875 = vadd.f32 %v865, %v874
  %876 = vset.pattern.permute.xlu0 5
  %877 = vperm.xlu0 %876, %v820
  %v878 = vpop.permute.xlu0 %877
  %v880 = vlaneseq
  %v881 = vshrl.u32 %v880, 7
  %v882 = vsub.s32 5, %v881
  %v883 = vrot.slane %v17, %v882
  %v884 = vmul.f32 %v878, %v883
  %v885 = vadd.f32 %v875, %v884
  %886 = vset.pattern.permute.xlu0 6
  %887 = vperm.xlu0 %886, %v820
  %v888 = vpop.permute.xlu0 %887
  %v890 = vlaneseq
  %v891 = vshrl.u32 %v890, 7
  %v892 = vsub.s32 6, %v891
  %v893 = vrot.slane %v17, %v892
  %v894 = vmul.f32 %v888, %v893
  %v895 = vadd.f32 %v885, %v894
  %896 = vset.pattern.permute.xlu0 7
  %897 = vperm.xlu0 %896, %v820
  %v898 = vpop.permute.xlu0 %897
  %v900 = vlaneseq
  %v901 = vshrl.u32 %v900, 7
  %v902 = vsub.s32 7, %v901
  %v903 = vrot.slane %v17, %v902
  %v904 = vmul.f32 %v898, %v903
  %v905 = vadd.f32 %v895, %v904
  %906 = vset.pattern.permute.xlu0 8
  %907 = vperm.xlu0 %906, %v820
  %v908 = vpop.permute.xlu0 %907
  %v910 = vlaneseq
  %v911 = vshrl.u32 %v910, 7
  %v912 = vsub.s32 0, %v911
  %v913 = vrot.slane %v18, %v912
  %v914 = vmul.f32 %v908, %v913
  %v915 = vadd.f32 %v905, %v914
  %916 = vset.pattern.permute.xlu0 9
  %917 = vperm.xlu0 %916, %v820
  %v918 = vpop.permute.xlu0 %917
  %v920 = vlaneseq
  %v921 = vshrl.u32 %v920, 7
  %v922 = vsub.s32 1, %v921
  %v923 = vrot.slane %v18, %v922
  %v924 = vmul.f32 %v918, %v923
  %v925 = vadd.f32 %v915, %v924
  %926 = vset.pattern.permute.xlu0 10
  %927 = vperm.xlu0 %926, %v820
  %v928 = vpop.permute.xlu0 %927
  %v930 = vlaneseq
  %v931 = vshrl.u32 %v930, 7
  %v932 = vsub.s32 2, %v931
  %v933 = vrot.slane %v18, %v932
  %v934 = vmul.f32 %v928, %v933
  %v935 = vadd.f32 %v925, %v934
  %936 = vset.pattern.permute.xlu0 11
  %937 = vperm.xlu0 %936, %v820
  %v938 = vpop.permute.xlu0 %937
  %v940 = vlaneseq
  %v941 = vshrl.u32 %v940, 7
  %v942 = vsub.s32 3, %v941
  %v943 = vrot.slane %v18, %v942
  %v944 = vmul.f32 %v938, %v943
  %v945 = vadd.f32 %v935, %v944
  %946 = vset.pattern.permute.xlu0 12
  %947 = vperm.xlu0 %946, %v820
  %v948 = vpop.permute.xlu0 %947
  %v950 = vlaneseq
  %v951 = vshrl.u32 %v950, 7
  %v952 = vsub.s32 4, %v951
  %v953 = vrot.slane %v18, %v952
  %v954 = vmul.f32 %v948, %v953
  %v955 = vadd.f32 %v945, %v954
  %956 = vset.pattern.permute.xlu0 13
  %957 = vperm.xlu0 %956, %v820
  %v958 = vpop.permute.xlu0 %957
  %v960 = vlaneseq
  %v961 = vshrl.u32 %v960, 7
  %v962 = vsub.s32 5, %v961
  %v963 = vrot.slane %v18, %v962
  %v964 = vmul.f32 %v958, %v963
  %v965 = vadd.f32 %v955, %v964
  %966 = vset.pattern.permute.xlu0 14
  %967 = vperm.xlu0 %966, %v820
  %v968 = vpop.permute.xlu0 %967
  %v970 = vlaneseq
  %v971 = vshrl.u32 %v970, 7
  %v972 = vsub.s32 6, %v971
  %v973 = vrot.slane %v18, %v972
  %v974 = vmul.f32 %v968, %v973
  %v975 = vadd.f32 %v965, %v974
  %976 = vset.pattern.permute.xlu0 15
  %977 = vperm.xlu0 %976, %v820
  %v978 = vpop.permute.xlu0 %977
  %v980 = vlaneseq
  %v981 = vshrl.u32 %v980, 7
  %v982 = vsub.s32 7, %v981
  %v983 = vrot.slane %v18, %v982
  %v984 = vmul.f32 %v978, %v983
  %v985 = vadd.f32 %v975, %v984
  %986 = vst [vmem:[%s3] sm:$0xff] %v985
  // Predicated region
  $region14: #{cnn_forward.1} parent=0 // pred_check
    _
  $region15: #{cnn_forward.1} parent=0 // pred_check_branch
    %988 = sbr.rel (0) target = $region17
  $region16: #{cnn_forward.1} parent=0 // pred_region
    _
  $region17: #{cnn_forward.1} parent=0 // pred_fallthru
    _
  // Predicated region
  $region18: #{cnn_forward.1} parent=0 // pred_check
    _
  $region19: #{cnn_forward.1} parent=0 // pred_check_branch
    %990 = sbr.rel (0) target = $region21
  $region20: #{cnn_forward.1} parent=0 // pred_region
    _
  $region21: #{cnn_forward.1} parent=0 // pred_fallthru
    _

</llo_original>
